<compile_context>
chip_gen: v5e
topology: v5e:2x2
jax: 0.10.0
libtpu: 0.0.40
codegen_flags: <defaults>
</compile_context>

<pallas_src>
import functools

import jax
import jax.numpy as jnp
import numpy as np
from jax import lax
from jax.experimental import pallas as pl
from jax.experimental.pallas import tpu as pltpu

EPS = 1e-5
LANE = 128            # pad channel dims to a multiple of the lane width
TILE_M_TARGET = 512   # target rows per 1x1-conv tile (multiple of 8)

_COMPILER_PARAMS = pltpu.CompilerParams(
    dimension_semantics=("parallel",),
    vmem_limit_bytes=32 * 1024 * 1024,   # working sets are << this on all gens (v7x incl.)
)


# ---------------------------------------------------------------------------
# small helpers
# ---------------------------------------------------------------------------
def _round_up(x, m):
    return (x + m - 1) // m * m


def _pick_tile(m, target=TILE_M_TARGET):
    """Largest multiple of 8 dividing m that is <= target (else m itself)."""
    if m <= target:
        return m
    t = (target // 8) * 8
    while t >= 8:
        if m % t == 0:
            return t
        t -= 8
    return m


def _pad_last(a, size):
    pad = size - a.shape[-1]
    if pad == 0:
        return a
    cfg = [(0, 0)] * (a.ndim - 1) + [(0, pad)]
    return jnp.pad(a, cfg)


def _pad2d(w, rows, cols):
    r, c = w.shape
    return jnp.pad(w, ((0, rows - r), (0, cols - c)))


def _partial_stats(y):
    """Per-tile (sum, sum-of-squares) over rows -> (1, 2, C) block."""
    s = jnp.sum(y, axis=0, keepdims=True)
    sq = jnp.sum(y * y, axis=0, keepdims=True)
    return jnp.concatenate([s, sq], axis=0)[None]


def _scale_bias(partials, count, gamma, beta):
    """Fold training-mode BN (biased var) into per-channel scale / bias."""
    total = jnp.sum(partials.astype(jnp.float32), axis=0)      # (2, C)
    mean = total[0] / count
    var = jnp.maximum(total[1] / count - mean * mean, 0.0)
    scale = gamma * lax.rsqrt(var + EPS)
    bias = beta - mean * scale
    return (scale.reshape(1, -1).astype(jnp.float32),
            bias.reshape(1, -1).astype(jnp.float32))


# ---------------------------------------------------------------------------
# kernels
# ---------------------------------------------------------------------------
def conv1x1_stats_kernel(x_ref, w_ref, y_ref, st_ref):
    """y = x @ w (bf16 operands, f32 MXU acc) + per-tile BN partial sums."""
    y = jnp.dot(x_ref[...].astype(jnp.bfloat16), w_ref[...],
                preferred_element_type=jnp.float32)
    y_ref[...] = y.astype(y_ref.dtype)
    st_ref[...] = _partial_stats(y)


def conv3x3_kernel(y1_ref, s1_ref, b1_ref, w_ref, y2_ref, st_ref,
                   xpad_ref, acc_ref, *, stride, h, w, ho, wo):
    """Fused BN1+ReLU -> in-kernel zero halo -> 3x3 conv (9 shifted matmuls
    accumulated into an f32 VMEM scratch) -> per-image BN partial sums."""
    c = y1_ref.shape[-1]
    a1 = jnp.maximum(
        y1_ref[...].astype(jnp.float32) * s1_ref[...] + b1_ref[...], 0.0)

    # fused halo padding: zero the padded VMEM scratch, write the interior.
    xpad_ref[...] = jnp.zeros_like(xpad_ref)
    xpad_ref[:, 1:h + 1, 1:w + 1, :] = a1.astype(xpad_ref.dtype)
    xp = xpad_ref[0]                                # (h+2, w+2, c)

    acc_ref[...] = jnp.zeros_like(acc_ref)
    for ky in range(3):
        for kx in range(3):
            if stride == 1:
                win = xp[ky:ky + ho, kx:kx + wo, :]
            else:
                win = xp[ky:ky + (ho - 1) * stride + 1:stride,
                         kx:kx + (wo - 1) * stride + 1:stride, :]
            acc_ref[...] += jnp.dot(win.reshape(ho * wo, c), w_ref[ky, kx],
                                    preferred_element_type=jnp.float32)

    y2 = acc_ref[...]
    y2_ref[...] = y2.reshape(1, ho, wo, c).astype(y2_ref.dtype)
    st_ref[...] = _partial_stats(y2)


def conv1x1_fused_kernel(y2_ref, s2_ref, b2_ref, w3_ref, y3_ref, st3_ref):
    """Fused BN2+ReLU -> final 1x1 conv -> per-tile BN partial sums."""
    a2 = jnp.maximum(
        y2_ref[...].astype(jnp.float32) * s2_ref[...] + b2_ref[...], 0.0)
    y3 = jnp.dot(a2.astype(jnp.bfloat16), w3_ref[...],
                 preferred_element_type=jnp.float32)
    y3_ref[...] = y3.astype(y3_ref.dtype)
    st3_ref[...] = _partial_stats(y3)


def conv1x1_fused_proj_kernel(y2_ref, s2_ref, b2_ref, w3_ref, xs_ref, ws_ref,
                              y3_ref, st3_ref, sc_ref, sts_ref):
    """conv1x1_fused_kernel + fused projection-shortcut 1x1 conv + its stats."""
    a2 = jnp.maximum(
        y2_ref[...].astype(jnp.float32) * s2_ref[...] + b2_ref[...], 0.0)
    y3 = jnp.dot(a2.astype(jnp.bfloat16), w3_ref[...],
                 preferred_element_type=jnp.float32)
    y3_ref[...] = y3.astype(y3_ref.dtype)
    st3_ref[...] = _partial_stats(y3)

    sc = jnp.dot(xs_ref[...].astype(jnp.bfloat16), ws_ref[...],
                 preferred_element_type=jnp.float32)
    sc_ref[...] = sc.astype(sc_ref.dtype)
    sts_ref[...] = _partial_stats(sc)


def add_bn_relu_kernel(y3_ref, s3_ref, b3_ref, sc_ref, ss_ref, bs_ref, o_ref):
    """out = relu(bn3(y3) + bn_s(sc)) with both BNs folded to scale/bias."""
    a = y3_ref[...].astype(jnp.float32) * s3_ref[...] + b3_ref[...]
    b = sc_ref[...].astype(jnp.float32) * ss_ref[...] + bs_ref[...]
    o_ref[...] = jnp.maximum(a + b, 0.0).astype(o_ref.dtype)


# ---------------------------------------------------------------------------
# forward wrapper
# ---------------------------------------------------------------------------
def bottleneck_forward(x_nchw, params, stride=1):
    N, cin, H, W = x_nchw.shape
    out_c = params["w1"].shape[0]
    exp_c = params["w3"].shape[0]
    cin_p = _round_up(cin, LANE)
    c1_p = _round_up(out_c, LANE)
    ce_p = _round_up(exp_c, LANE)
    f32, bf16 = jnp.float32, jnp.bfloat16

    Ho = (H - 1) // stride + 1
    Wo = (W - 1) // stride + 1
    M1, M2 = N * H * W, N * Ho * Wo
    tm1, tm2 = _pick_tile(M1), _pick_tile(M2)
    T1, T2 = M1 // tm1, M2 // tm2

    # Layout glue: NCHW -> NHWC, channels zero-padded to the lane width.
    # TODO(synk): accept NHWC / lane-aligned channels from the caller so the
    # transpose + pad copies disappear entirely.
    x = _pad_last(jnp.transpose(x_nchw, (0, 2, 3, 1)), cin_p)

    # ---- stage 1: 1x1 conv + BN1 partial stats (tiled over M) --------------
    w1 = _pad2d(params["w1"].reshape(out_c, cin).T, cin_p, c1_p).astype(bf16)
    y1, st1 = pl.pallas_call(
        conv1x1_stats_kernel,
        grid=(T1,),
        in_specs=[pl.BlockSpec((tm1, cin_p), lambda i: (i, 0)),
                  pl.BlockSpec((cin_p, c1_p), lambda i: (0, 0))],
        out_specs=[pl.BlockSpec((tm1, c1_p), lambda i: (i, 0)),
                   pl.BlockSpec((1, 2, c1_p), lambda i: (i, 0, 0))],
        out_shape=(jax.ShapeDtypeStruct((M1, c1_p), bf16),
                   jax.ShapeDtypeStruct((T1, 2, c1_p), f32)),
        compiler_params=_COMPILER_PARAMS,
    )(x.reshape(M1, cin_p), w1)
    s1, b1 = _scale_bias(st1, M1, _pad_last(params["g1"], c1_p),
                         _pad_last(params["b1"], c1_p))

    # ---- stage 2: fused BN1+ReLU, in-kernel halo, 3x3 conv, BN2 stats ------
    w2 = jnp.transpose(params["w2"], (2, 3, 1, 0))           # (3, 3, Cin, Cout)
    w2 = jnp.pad(w2, ((0, 0), (0, 0),
                      (0, c1_p - out_c), (0, c1_p - out_c))).astype(bf16)
    kern2 = functools.partial(conv3x3_kernel, stride=stride,
                              h=H, w=W, ho=Ho, wo=Wo)
    y2, st2 = pl.pallas_call(
        kern2,
        grid=(N,),
        in_specs=[pl.BlockSpec((1, H, W, c1_p), lambda n: (n, 0, 0, 0)),
                  pl.BlockSpec((1, c1_p), lambda n: (0, 0)),
                  pl.BlockSpec((1, c1_p), lambda n: (0, 0)),
                  pl.BlockSpec((3, 3, c1_p, c1_p), lambda n: (0, 0, 0, 0))],
        out_specs=[pl.BlockSpec((1, Ho, Wo, c1_p), lambda n: (n, 0, 0, 0)),
                   pl.BlockSpec((1, 2, c1_p), lambda n: (n, 0, 0))],
        out_shape=(jax.ShapeDtypeStruct((N, Ho, Wo, c1_p), bf16),
                   jax.ShapeDtypeStruct((N, 2, c1_p), f32)),
        scratch_shapes=[pltpu.VMEM((1, H + 2, W + 2, c1_p), bf16),
                        pltpu.VMEM((Ho * Wo, c1_p), f32)],
        compiler_params=_COMPILER_PARAMS,
    )(y1.reshape(N, H, W, c1_p), s1, b1, w2)
    s2, b2 = _scale_bias(st2, M2, _pad_last(params["g2"], c1_p),
                         _pad_last(params["b2"], c1_p))

    # ---- stage 3: fused BN2+ReLU, final 1x1 conv (+ projection shortcut) ---
    w3 = _pad2d(params["w3"].reshape(exp_c, out_c).T, c1_p, ce_p).astype(bf16)
    y2_2d = y2.reshape(M2, c1_p)
    has_proj = (stride != 1) or (cin != exp_c)
    if has_proj:
        # TODO(synk): push the strided spatial downsample into the kernel via a
        # BlockSpec index_map / pl.ds(stride=...) instead of this XLA slice.
        xs = x[:, ::stride, ::stride, :].reshape(M2, cin_p)
        ws = _pad2d(params["ws"].reshape(exp_c, cin).T, cin_p, ce_p).astype(bf16)
        y3, st3, sc, sts = pl.pallas_call(
            conv1x1_fused_proj_kernel,
            grid=(T2,),
            in_specs=[pl.BlockSpec((tm2, c1_p), lambda i: (i, 0)),
                      pl.BlockSpec((1, c1_p), lambda i: (0, 0)),
                      pl.BlockSpec((1, c1_p), lambda i: (0, 0)),
                      pl.BlockSpec((c1_p, ce_p), lambda i: (0, 0)),
                      pl.BlockSpec((tm2, cin_p), lambda i: (i, 0)),
                      pl.BlockSpec((cin_p, ce_p), lambda i: (0, 0))],
            out_specs=[pl.BlockSpec((tm2, ce_p), lambda i: (i, 0)),
                       pl.BlockSpec((1, 2, ce_p), lambda i: (i, 0, 0)),
                       pl.BlockSpec((tm2, ce_p), lambda i: (i, 0)),
                       pl.BlockSpec((1, 2, ce_p), lambda i: (i, 0, 0))],
            out_shape=(jax.ShapeDtypeStruct((M2, ce_p), bf16),
                       jax.ShapeDtypeStruct((T2, 2, ce_p), f32),
                       jax.ShapeDtypeStruct((M2, ce_p), bf16),
                       jax.ShapeDtypeStruct((T2, 2, ce_p), f32)),
            compiler_params=_COMPILER_PARAMS,
        )(y2_2d, s2, b2, w3, xs, ws)
        ss, bs = _scale_bias(sts, M2, _pad_last(params["gs"], ce_p),
                             _pad_last(params["bs"], ce_p))
        sc_in = sc
    else:
        y3, st3 = pl.pallas_call(
            conv1x1_fused_kernel,
            grid=(T2,),
            in_specs=[pl.BlockSpec((tm2, c1_p), lambda i: (i, 0)),
                      pl.BlockSpec((1, c1_p), lambda i: (0, 0)),
                      pl.BlockSpec((1, c1_p), lambda i: (0, 0)),
                      pl.BlockSpec((c1_p, ce_p), lambda i: (0, 0))],
            out_specs=[pl.BlockSpec((tm2, ce_p), lambda i: (i, 0)),
                       pl.BlockSpec((1, 2, ce_p), lambda i: (i, 0, 0))],
            out_shape=(jax.ShapeDtypeStruct((M2, ce_p), bf16),
                       jax.ShapeDtypeStruct((T2, 2, ce_p), f32)),
            compiler_params=_COMPILER_PARAMS,
        )(y2_2d, s2, b2, w3)
        # identity shortcut: sc is x itself (cin == exp_c); scale=1, bias=0.
        sc_in = x.reshape(M2, ce_p)
        ss = jnp.ones((1, ce_p), f32)
        bs = jnp.zeros((1, ce_p), f32)
    s3, b3 = _scale_bias(st3, M2, _pad_last(params["g3"], ce_p),
                         _pad_last(params["b3"], ce_p))

    # ---- stage 4: fused BN3 + BN_shortcut + residual add + outer ReLU ------
    out2d = pl.pallas_call(
        add_bn_relu_kernel,
        grid=(T2,),
        in_specs=[pl.BlockSpec((tm2, ce_p), lambda i: (i, 0)),
                  pl.BlockSpec((1, ce_p), lambda i: (0, 0)),
                  pl.BlockSpec((1, ce_p), lambda i: (0, 0)),
                  pl.BlockSpec((tm2, ce_p), lambda i: (i, 0)),
                  pl.BlockSpec((1, ce_p), lambda i: (0, 0)),
                  pl.BlockSpec((1, ce_p), lambda i: (0, 0))],
        out_specs=pl.BlockSpec((tm2, ce_p), lambda i: (i, 0)),
        out_shape=jax.ShapeDtypeStruct((M2, ce_p), x_nchw.dtype),
        compiler_params=_COMPILER_PARAMS,
    )(y3, s3, b3, sc_in, ss, bs)

    out = out2d.reshape(N, Ho, Wo, ce_p)[:, :, :, :exp_c]
    return jnp.transpose(out, (0, 3, 1, 2))       # back to NCHW


# ---------------------------------------------------------------------------
# pure-JAX reference (NCHW, mirrors the PyTorch module exactly, train-mode BN)
# ---------------------------------------------------------------------------
def _conv_nchw(x, w, stride, padding):
    return lax.conv_general_dilated(
        x, w, (stride, stride), [(padding, padding)] * 2,
        dimension_numbers=("NCHW", "OIHW", "NCHW"))


def _bn_nchw(y, gamma, beta):
    mean = y.mean(axis=(0, 2, 3), keepdims=True)
    var = jnp.square(y - mean).mean(axis=(0, 2, 3), keepdims=True)
    return ((y - mean) * lax.rsqrt(var + EPS) * gamma.reshape(1, -1, 1, 1)
            + beta.reshape(1, -1, 1, 1))


def bottleneck_reference(x, params, stride=1):
    y = jnp.maximum(_bn_nchw(_conv_nchw(x, params["w1"], 1, 0),
                             params["g1"], params["b1"]), 0.0)
    y = jnp.maximum(_bn_nchw(_conv_nchw(y, params["w2"], stride, 1),
                             params["g2"], params["b2"]), 0.0)
    y = _bn_nchw(_conv_nchw(y, params["w3"], 1, 0), params["g3"], params["b3"])
    cin = x.shape[1]
    exp_c = params["w3"].shape[0]
    if stride != 1 or cin != exp_c:
        sc = _bn_nchw(_conv_nchw(x, params["ws"], stride, 0),
                      params["gs"], params["bs"])
    else:
        sc = x
    return jnp.maximum(y + sc, 0.0)


# ---------------------------------------------------------------------------
if __name__ == "__main__":
    key = jax.random.PRNGKey(0)

    def make_params(k, cin, out_c, exp_c, with_proj):
        ks = jax.random.split(k, 4)
        p = {
            "w1": 0.1 * jax.random.normal(ks[0], (out_c, cin, 1, 1), jnp.float32),
            "g1": jnp.ones((out_c,), jnp.float32), "b1": jnp.zeros((out_c,), jnp.float32),
            "w2": 0.1 * jax.random.normal(ks[1], (out_c, out_c, 3, 3), jnp.float32),
            "g2": jnp.ones((out_c,), jnp.float32), "b2": jnp.zeros((out_c,), jnp.float32),
            "w3": 0.1 * jax.random.normal(ks[2], (exp_c, out_c, 1, 1), jnp.float32),
            "g3": jnp.ones((exp_c,), jnp.float32), "b3": jnp.zeros((exp_c,), jnp.float32),
        }
        if with_proj:
            p["ws"] = 0.1 * jax.random.normal(ks[3], (exp_c, cin, 1, 1), jnp.float32)
            p["gs"] = jnp.ones((exp_c,), jnp.float32)
            p["bs"] = jnp.zeros((exp_c,), jnp.float32)
        return p

    k1, k2, k3, k4 = jax.random.split(key, 4)

    # Case 1: projection shortcut (Cin != out_c * expansion), stride = 1.
    N, Cin, H, W, out_c, stride = 2, 16, 16, 16, 8, 1
    exp_c = out_c * 4
    x = jax.random.normal(k1, (N, Cin, H, W), jnp.float32)
    params = make_params(k2, Cin, out_c, exp_c, with_proj=True)
    out = jax.block_until_ready(bottleneck_forward(x, params, stride))
    ref = jax.block_until_ready(bottleneck_reference(x, params, stride))
    np.testing.assert_allclose(np.asarray(out), np.asarray(ref), atol=3e-2, rtol=3e-2)
    assert out.shape == (N, exp_c, H // stride, W // stride)

    # Case 2: identity shortcut (Cin == out_c * expansion), stride = 1.
    Cin2 = exp_c
    x2 = jax.random.normal(k3, (N, Cin2, H, W), jnp.float32)
    params2 = make_params(k4, Cin2, out_c, exp_c, with_proj=False)
    out2 = jax.block_until_ready(bottleneck_forward(x2, params2, 1))
    ref2 = jax.block_until_ready(bottleneck_reference(x2, params2, 1))
    np.testing.assert_allclose(np.asarray(out2), np.asarray(ref2), atol=3e-2, rtol=3e-2)
    assert out2.shape == (N, exp_c, H, W)

    print("KERNEL_OK")
</pallas_src>

<mosaic_0001>
module attributes {stable_mosaic.version = 11 : i64} {
  func.func @conv1x1_stats_kernel(%arg0: i32, %arg1: memref<512x128xf32, #tpu.memory_space<vmem>>, %arg2: memref<128x128xbf16, #tpu.memory_space<vmem>>, %arg3: memref<512x128xbf16, #tpu.memory_space<vmem>>, %arg4: memref<1x2x128xf32, #tpu.memory_space<vmem>>) attributes {dimension_semantics = [#tpu.dimension_semantics<parallel>], iteration_bounds = array<i64: 1>, scalar_prefetch = 0 : i64, scratch_operands = 0 : i64, tpu.core_type = #tpu.core_type<tc>, window_params = [{transform_indices = @transform_0, window_bounds = array<i64: 512, 128>}, {pipeline_mode = #tpu.pipeline_mode<synchronous>, transform_indices = @transform_1, window_bounds = array<i64: 128, 128>}, {transform_indices = @transform_2, window_bounds = array<i64: 512, 128>}, {transform_indices = @transform_3, window_bounds = array<i64: 1, 2, 128>}]} {
    %c0 = arith.constant 0 : index
    %c0_0 = arith.constant 0 : index
    %0 = vector.load %arg1[%c0, %c0_0] : memref<512x128xf32, #tpu.memory_space<vmem>>, vector<512x128xf32>
    %1 = arith.truncf %0 : vector<512x128xf32> to vector<512x128xbf16>
    %c0_1 = arith.constant 0 : index
    %c0_2 = arith.constant 0 : index
    %2 = vector.load %arg2[%c0_1, %c0_2] : memref<128x128xbf16, #tpu.memory_space<vmem>>, vector<128x128xbf16>
    %cst = arith.constant dense<0.000000e+00> : vector<512x128xf32>
    %3 = tpu.matmul %1, %2, %cst {dimension_numbers = #tpu.dot_dimension_numbers<[1], [0], [0], [1], [0, 0, 1, 1], [], []>} : vector<512x128xbf16>, vector<128x128xbf16>, vector<512x128xf32> -> vector<512x128xf32>
    %4 = arith.truncf %3 : vector<512x128xf32> to vector<512x128xbf16>
    %c0_3 = arith.constant 0 : index
    %c0_4 = arith.constant 0 : index
    %5 = vector.load %arg3[%c0_3, %c0_4] : memref<512x128xbf16, #tpu.memory_space<vmem>>, vector<512x128xbf16>
    tpu.vector_store %arg3[%c0_3, %c0_4], %4 {strides = array<i32>} : memref<512x128xbf16, #tpu.memory_space<vmem>>, vector<512x128xbf16>,
    %cst_5 = arith.constant dense<0.000000e+00> : vector<128xf32>
    %6 = vector.multi_reduction <add>, %3, %cst_5 [0] : vector<512x128xf32> to vector<128xf32>
    %7 = vector.shape_cast %6 : vector<128xf32> to vector<1x128xf32>
    %8 = arith.mulf %3, %3 : vector<512x128xf32>
    %cst_6 = arith.constant dense<0.000000e+00> : vector<128xf32>
    %9 = vector.multi_reduction <add>, %8, %cst_6 [0] : vector<512x128xf32> to vector<128xf32>
    %10 = vector.shape_cast %9 : vector<128xf32> to vector<1x128xf32>
    %11 = tpu.concatenate %7, %10 in 0 : vector<1x128xf32>, vector<1x128xf32> -> vector<2x128xf32>
    %12 = vector.shape_cast %11 : vector<2x128xf32> to vector<1x2x128xf32>
    %c0_7 = arith.constant 0 : index
    %c0_8 = arith.constant 0 : index
    %c0_9 = arith.constant 0 : index
    %13 = vector.load %arg4[%c0_7, %c0_8, %c0_9] : memref<1x2x128xf32, #tpu.memory_space<vmem>>, vector<1x2x128xf32>
    tpu.vector_store %arg4[%c0_7, %c0_8, %c0_9], %12 {strides = array<i32>} : memref<1x2x128xf32, #tpu.memory_space<vmem>>, vector<1x2x128xf32>,
    return
  }
  func.func @transform_0(%arg0: i32) -> (i32, i32) {
    %c0_i32 = arith.constant 0 : i32
    %c0_i32_0 = arith.constant 0 : i32
    return %arg0, %c0_i32 : i32, i32
  }
  func.func @transform_1(%arg0: i32) -> (i32, i32) {
    %c0_i32 = arith.constant 0 : i32
    %c0_i32_0 = arith.constant 0 : i32
    %c0_i32_1 = arith.constant 0 : i32
    return %c0_i32, %c0_i32_0 : i32, i32
  }
  func.func @transform_2(%arg0: i32) -> (i32, i32) {
    %c0_i32 = arith.constant 0 : i32
    %c0_i32_0 = arith.constant 0 : i32
    return %arg0, %c0_i32 : i32, i32
  }
  func.func @transform_3(%arg0: i32) -> (i32, i32, i32) {
    %c0_i32 = arith.constant 0 : i32
    %c0_i32_0 = arith.constant 0 : i32
    %c0_i32_1 = arith.constant 0 : i32
    return %arg0, %c0_i32, %c0_i32_0 : i32, i32, i32
  }
}

</mosaic_0001>

<llo_original>
// kernel: tpu_custom_call.1
$region0: #{tpu_custom_call.1}
  #allocation0 [shape = 'u32[]', space=smem, size = 0x4, offset = 0x4, fixed_abs, tag = 'smem constant byte address 0x4 - core index']
  #allocation1 [shape = 'u32[72,128]{1,0:T(1,128)}', space=vmem, size = 0x9000, scoped, tag = 'internal scratch']
  %s0 = inlined_call_operand.hbm [shape: f32[512,128], index: 0, kind: input, shape index: {}]
  %s1 = inlined_call_operand.hbm [shape: bf16[128,128], index: 1, kind: input, shape index: {}]
  %s2 = inlined_call_operand.hbm [shape: bf16[512,128], index: 2, kind: output, shape index: {0}]
  %s3 = inlined_call_operand.hbm [shape: f32[1,2,128], index: 3, kind: output, shape index: {1}]
  %4 = xla_tuple %s2, %s3
  %s5 = sld [smem:[#allocation0]]
  $region34: #{tpu_custom_call.1} parent=0
    _
  %s7 = ssub.s32 1, %s5
  %s8 = scalar_select 0, %s7, %s5
  $region1: #{tpu_custom_call.1} parent=0
    #allocation2 [shape = 'u8[262144]{0}', space=vmem, size = 0x40000, scoped, tag = 'input window, operand 0, single buffered']
    #allocation3 [shape = 's32[1]{0}', space=sflag, size = 0x4, scoped, tag = 'scoped memory for tpu_custom_call.1']
    #allocation4 [shape = 's32[1]{0}', space=sflag, size = 0x4, scoped, tag = 'scoped memory for tpu_custom_call.1']
    #allocation5 [shape = 'u8[32768]{0}', space=vmem, size = 0x8000, scoped, tag = 'input window, operand 1, single buffered']
    #allocation6 [shape = 's32[1]{0}', space=sflag, size = 0x4, scoped, tag = 'scoped memory for tpu_custom_call.1']
    #allocation7 [shape = 'u8[131072]{0}', space=vmem, size = 0x20000, scoped, tag = 'output window, operand 0, single buffered']
    #allocation8 [shape = 'u8[1024]{0}', space=vmem, size = 0x400, scoped, tag = 'output window, operand 1, single buffered']
    #allocation9 [shape = 's32[1]{0}', space=sflag, size = 0x4, scoped, tag = 'scoped memory for tpu_custom_call.1']
    %9 = vsyncpa [#allocation3], 0
    %10 = vsyncpa [#allocation6], 0
    %11 = vsyncpa [#allocation4], 0
    %12 = vsyncpa [#allocation9], 0
    // Predicated region
    $region2: #{tpu_custom_call.1} parent=1 // pred_check
      _
    $region3: #{tpu_custom_call.1} parent=1 // pred_check_branch
      %14 = sbr.rel (0) target = $region5
    $region4: #{tpu_custom_call.1} parent=1 // pred_region
      %16 = vsyncadd [#allocation3], 0
      %s17 = sshll.u32 %s0, 4
      %s18 = int_to_ptr.hbm [resolvable:$true] %s17
      %s19 = sshll.u32 [#allocation2], 4
      %s20 = int_to_ptr.vmem [resolvable:$true] %s19
      %25 = dma.hbm_to_vmem [thread:$0]  %s18, 8192, %s20, [#allocation3], 128, 128, 8
    $region5: #{tpu_custom_call.1} parent=1 // pred_fallthru
      _
    // Predicated region
    $region6: #{tpu_custom_call.1} parent=1 // pred_check
      _
    $region7: #{tpu_custom_call.1} parent=1 // pred_check_branch
      %27 = sbr.rel (0) target = $region9
    $region8: #{tpu_custom_call.1} parent=1 // pred_region
      %29 = vsyncadd [#allocation6], 0
      %s30 = sshll.u32 %s1, 4
      %s31 = int_to_ptr.hbm [resolvable:$true] %s30
      %s32 = sshll.u32 [#allocation5], 4
      %s33 = int_to_ptr.vmem [resolvable:$true] %s32
      %38 = dma.hbm_to_vmem [thread:$0]  %s31, 1024, %s33, [#allocation6], 64, 64, 4
    $region9: #{tpu_custom_call.1} parent=1 // pred_fallthru
      _
    // Predicated region
    $region10: #{tpu_custom_call.1} parent=1 // pred_check
      _
    $region11: #{tpu_custom_call.1} parent=1 // pred_check_branch
      %40 = sbr.rel (0) target = $region13
    $region12: #{tpu_custom_call.1} parent=1 // pred_region
      %42 = dma.done [#allocation3], 8192
    $region13: #{tpu_custom_call.1} parent=1 // pred_fallthru
      _
    // Predicated region
    $region14: #{tpu_custom_call.1} parent=1 // pred_check
      _
    $region15: #{tpu_custom_call.1} parent=1 // pred_check_branch
      %44 = sbr.rel (0) target = $region17
    $region16: #{tpu_custom_call.1} parent=1 // pred_region
      %46 = dma.done [#allocation6], 1024
    $region17: #{tpu_custom_call.1} parent=1 // pred_fallthru
      _
    %v47 = vld [vmem:[#allocation2] sm:$0xff]
    %v48 = vld [vmem:[#allocation2 + $0x8] sm:$0xff]
    %v49 = vld [vmem:[#allocation2 + $0x10] sm:$0xff]
    %v50 = vld [vmem:[#allocation2 + $0x18] sm:$0xff]
    %v51 = vld [vmem:[#allocation2 + $0x20] sm:$0xff]
    %v52 = vld [vmem:[#allocation2 + $0x28] sm:$0xff]
    %v53 = vld [vmem:[#allocation2 + $0x30] sm:$0xff]
    %v54 = vld [vmem:[#allocation2 + $0x38] sm:$0xff]
    %v55 = vld [vmem:[#allocation2 + $0x40] sm:$0xff]
    %v56 = vld [vmem:[#allocation2 + $0x48] sm:$0xff]
    %v57 = vld [vmem:[#allocation2 + $0x50] sm:$0xff]
    %v58 = vld [vmem:[#allocation2 + $0x58] sm:$0xff]
    %v59 = vld [vmem:[#allocation2 + $0x60] sm:$0xff]
    %v60 = vld [vmem:[#allocation2 + $0x68] sm:$0xff]
    %v61 = vld [vmem:[#allocation2 + $0x70] sm:$0xff]
    %v62 = vld [vmem:[#allocation2 + $0x78] sm:$0xff]
    %v63 = vld [vmem:[#allocation2 + $0x80] sm:$0xff]
    %v64 = vld [vmem:[#allocation2 + $0x88] sm:$0xff]
    %v65 = vld [vmem:[#allocation2 + $0x90] sm:$0xff]
    %v66 = vld [vmem:[#allocation2 + $0x98] sm:$0xff]
    %v67 = vld [vmem:[#allocation2 + $0xa0] sm:$0xff]
    %v68 = vld [vmem:[#allocation2 + $0xa8] sm:$0xff]
    %v69 = vld [vmem:[#allocation2 + $0xb0] sm:$0xff]
    %v70 = vld [vmem:[#allocation2 + $0xb8] sm:$0xff]
    %v71 = vld [vmem:[#allocation2 + $0xc0] sm:$0xff]
    %v72 = vld [vmem:[#allocation2 + $0xc8] sm:$0xff]
    %v73 = vld [vmem:[#allocation2 + $0xd0] sm:$0xff]
    %v74 = vld [vmem:[#allocation2 + $0xd8] sm:$0xff]
    %v75 = vld [vmem:[#allocation2 + $0xe0] sm:$0xff]
    %v76 = vld [vmem:[#allocation2 + $0xe8] sm:$0xff]
    %v77 = vld [vmem:[#allocation2 + $0xf0] sm:$0xff]
    %v78 = vld [vmem:[#allocation2 + $0xf8] sm:$0xff]
    %v79 = vld [vmem:[#allocation2 + $0x100] sm:$0xff]
    %v80 = vld [vmem:[#allocation2 + $0x108] sm:$0xff]
    %v81 = vld [vmem:[#allocation2 + $0x110] sm:$0xff]
    %v82 = vld [vmem:[#allocation2 + $0x118] sm:$0xff]
    %v83 = vld [vmem:[#allocation2 + $0x120] sm:$0xff]
    %v84 = vld [vmem:[#allocation2 + $0x128] sm:$0xff]
    %v85 = vld [vmem:[#allocation2 + $0x130] sm:$0xff]
    %v86 = vld [vmem:[#allocation2 + $0x138] sm:$0xff]
    %v87 = vld [vmem:[#allocation2 + $0x140] sm:$0xff]
    %v88 = vld [vmem:[#allocation2 + $0x148] sm:$0xff]
    %v89 = vld [vmem:[#allocation2 + $0x150] sm:$0xff]
    %v90 = vld [vmem:[#allocation2 + $0x158] sm:$0xff]
    %v91 = vld [vmem:[#allocation2 + $0x160] sm:$0xff]
    %v92 = vld [vmem:[#allocation2 + $0x168] sm:$0xff]
    %v93 = vld [vmem:[#allocation2 + $0x170] sm:$0xff]
    %v94 = vld [vmem:[#allocation2 + $0x178] sm:$0xff]
    %v95 = vld [vmem:[#allocation2 + $0x180] sm:$0xff]
    %v96 = vld [vmem:[#allocation2 + $0x188] sm:$0xff]
    %v97 = vld [vmem:[#allocation2 + $0x190] sm:$0xff]
    %v98 = vld [vmem:[#allocation2 + $0x198] sm:$0xff]
    %v99 = vld [vmem:[#allocation2 + $0x1a0] sm:$0xff]
    %v100 = vld [vmem:[#allocation2 + $0x1a8] sm:$0xff]
    %v101 = vld [vmem:[#allocation2 + $0x1b0] sm:$0xff]
    %v102 = vld [vmem:[#allocation2 + $0x1b8] sm:$0xff]
    %v103 = vld [vmem:[#allocation2 + $0x1c0] sm:$0xff]
    %v104 = vld [vmem:[#allocation2 + $0x1c8] sm:$0xff]
    %v105 = vld [vmem:[#allocation2 + $0x1d0] sm:$0xff]
    %v106 = vld [vmem:[#allocation2 + $0x1d8] sm:$0xff]
    %v107 = vld [vmem:[#allocation2 + $0x1e0] sm:$0xff]
    %v108 = vld [vmem:[#allocation2 + $0x1e8] sm:$0xff]
    %v109 = vld [vmem:[#allocation2 + $0x1f0] sm:$0xff]
    %v110 = vld [vmem:[#allocation2 + $0x1f8] sm:$0xff]
    %v111 = vpack.c.bf16 %v48, %v47
    %v112 = vpack.c.bf16 %v50, %v49
    %v113 = vpack.c.bf16 %v52, %v51
    %v114 = vpack.c.bf16 %v54, %v53
    %v115 = vpack.c.bf16 %v56, %v55
    %v116 = vpack.c.bf16 %v58, %v57
    %v117 = vpack.c.bf16 %v60, %v59
    %v118 = vpack.c.bf16 %v62, %v61
    %v119 = vpack.c.bf16 %v64, %v63
    %v120 = vpack.c.bf16 %v66, %v65
    %v121 = vpack.c.bf16 %v68, %v67
    %v122 = vpack.c.bf16 %v70, %v69
    %v123 = vpack.c.bf16 %v72, %v71
    %v124 = vpack.c.bf16 %v74, %v73
    %v125 = vpack.c.bf16 %v76, %v75
    %v126 = vpack.c.bf16 %v78, %v77
    %v127 = vpack.c.bf16 %v80, %v79
    %v128 = vpack.c.bf16 %v82, %v81
    %v129 = vpack.c.bf16 %v84, %v83
    %v130 = vpack.c.bf16 %v86, %v85
    %v131 = vpack.c.bf16 %v88, %v87
    %v132 = vpack.c.bf16 %v90, %v89
    %v133 = vpack.c.bf16 %v92, %v91
    %v134 = vpack.c.bf16 %v94, %v93
    %v135 = vpack.c.bf16 %v96, %v95
    %v136 = vpack.c.bf16 %v98, %v97
    %v137 = vpack.c.bf16 %v100, %v99
    %v138 = vpack.c.bf16 %v102, %v101
    %v139 = vpack.c.bf16 %v104, %v103
    %v140 = vpack.c.bf16 %v106, %v105
    %v141 = vpack.c.bf16 %v108, %v107
    %v142 = vpack.c.bf16 %v110, %v109
    %v143 = vld [vmem:[#allocation5] sm:$0xf]
    %v144 = vld [vmem:[#allocation5 + $0x4] sm:$0xf]
    %v145 = vld [vmem:[#allocation5 + $0x8] sm:$0xf]
    %v146 = vld [vmem:[#allocation5 + $0xc] sm:$0xf]
    %v147 = vld [vmem:[#allocation5 + $0x10] sm:$0xf]
    %v148 = vld [vmem:[#allocation5 + $0x14] sm:$0xf]
    %v149 = vld [vmem:[#allocation5 + $0x18] sm:$0xf]
    %v150 = vld [vmem:[#allocation5 + $0x1c] sm:$0xf]
    %v151 = vld [vmem:[#allocation5 + $0x20] sm:$0xf]
    %v152 = vld [vmem:[#allocation5 + $0x24] sm:$0xf]
    %v153 = vld [vmem:[#allocation5 + $0x28] sm:$0xf]
    %v154 = vld [vmem:[#allocation5 + $0x2c] sm:$0xf]
    %v155 = vld [vmem:[#allocation5 + $0x30] sm:$0xf]
    %v156 = vld [vmem:[#allocation5 + $0x34] sm:$0xf]
    %v157 = vld [vmem:[#allocation5 + $0x38] sm:$0xf]
    %v158 = vld [vmem:[#allocation5 + $0x3c] sm:$0xf]
    %v175 = vunpack.c.l.b16 %v143
    %v176 = vunpack.c.l.b16 %v144
    %v177 = vunpack.c.l.b16 %v145
    %v178 = vunpack.c.l.b16 %v146
    %v179 = vunpack.c.l.b16 %v147
    %v180 = vunpack.c.l.b16 %v148
    %v181 = vunpack.c.l.b16 %v149
    %v182 = vunpack.c.l.b16 %v150
    %v183 = vunpack.c.l.b16 %v151
    %v184 = vunpack.c.l.b16 %v152
    %v185 = vunpack.c.l.b16 %v153
    %v186 = vunpack.c.l.b16 %v154
    %v187 = vunpack.c.l.b16 %v155
    %v188 = vunpack.c.l.b16 %v156
    %v189 = vunpack.c.l.b16 %v157
    %v190 = vunpack.c.l.b16 %v158
    %v191 = vpack.c.b16 %v176, %v175
    %v192 = vpack.c.b16 %v178, %v177
    %v193 = vpack.c.b16 %v180, %v179
    %v194 = vpack.c.b16 %v182, %v181
    %v195 = vpack.c.b16 %v184, %v183
    %v196 = vpack.c.b16 %v186, %v185
    %v197 = vpack.c.b16 %v188, %v187
    %v198 = vpack.c.b16 %v190, %v189
    %207 = vmatpush.bf16.msra.mxu0 %v198
    %208 = vmatpush.bf16.msra.mxu0 %v197
    %209 = vmatpush.bf16.msra.mxu0 %v196
    %210 = vmatpush.bf16.msra.mxu0 %v195
    %211 = vmatpush.bf16.msra.mxu0 %v194
    %212 = vmatpush.bf16.msra.mxu0 %v193
    %213 = vmatpush.bf16.msra.mxu0 %v192
    %214 = vmatpush.bf16.msra.mxu0 %v191
    %215 = vmatmul.bf16.gmra.mxu0 %v111
    %v216 = vpop.f32.mrf.mxu0
    %v217 = vadd.f32 0.0, %v216
    %v218 = vpop.f32.mrf.mxu0
    %v219 = vadd.f32 0.0, %v218
    %220 = vmatmul.bf16.gmra.mxu0 %v112
    %v221 = vpop.f32.mrf.mxu0
    %v222 = vadd.f32 0.0, %v221
    %v223 = vpop.f32.mrf.mxu0
    %v224 = vadd.f32 0.0, %v223
    %225 = vmatmul.bf16.gmra.mxu0 %v113
    %v226 = vpop.f32.mrf.mxu0
    %v227 = vadd.f32 0.0, %v226
    %v228 = vpop.f32.mrf.mxu0
    %v229 = vadd.f32 0.0, %v228
    %230 = vmatmul.bf16.gmra.mxu0 %v114
    %v231 = vpop.f32.mrf.mxu0
    %v232 = vadd.f32 0.0, %v231
    %v233 = vpop.f32.mrf.mxu0
    %v234 = vadd.f32 0.0, %v233
    %235 = vmatmul.bf16.gmra.mxu0 %v115
    %v236 = vpop.f32.mrf.mxu0
    %v237 = vadd.f32 0.0, %v236
    %v238 = vpop.f32.mrf.mxu0
    %v239 = vadd.f32 0.0, %v238
    %240 = vmatmul.bf16.gmra.mxu0 %v116
    %v241 = vpop.f32.mrf.mxu0
    %v242 = vadd.f32 0.0, %v241
    %v243 = vpop.f32.mrf.mxu0
    %v244 = vadd.f32 0.0, %v243
    %245 = vmatmul.bf16.gmra.mxu0 %v117
    %v246 = vpop.f32.mrf.mxu0
    %v247 = vadd.f32 0.0, %v246
    %v248 = vpop.f32.mrf.mxu0
    %v249 = vadd.f32 0.0, %v248
    %250 = vmatmul.bf16.gmra.mxu0 %v118
    %v251 = vpop.f32.mrf.mxu0
    %v252 = vadd.f32 0.0, %v251
    %v253 = vpop.f32.mrf.mxu0
    %v254 = vadd.f32 0.0, %v253
    %255 = vmatmul.bf16.gmra.mxu0 %v119
    %v256 = vpop.f32.mrf.mxu0
    %v257 = vadd.f32 0.0, %v256
    %v258 = vpop.f32.mrf.mxu0
    %v259 = vadd.f32 0.0, %v258
    %260 = vmatmul.bf16.gmra.mxu0 %v120
    %v261 = vpop.f32.mrf.mxu0
    %v262 = vadd.f32 0.0, %v261
    %v263 = vpop.f32.mrf.mxu0
    %v264 = vadd.f32 0.0, %v263
    %265 = vmatmul.bf16.gmra.mxu0 %v121
    %v266 = vpop.f32.mrf.mxu0
    %v267 = vadd.f32 0.0, %v266
    %v268 = vpop.f32.mrf.mxu0
    %v269 = vadd.f32 0.0, %v268
    %270 = vmatmul.bf16.gmra.mxu0 %v122
    %v271 = vpop.f32.mrf.mxu0
    %v272 = vadd.f32 0.0, %v271
    %v273 = vpop.f32.mrf.mxu0
    %v274 = vadd.f32 0.0, %v273
    %275 = vmatmul.bf16.gmra.mxu0 %v123
    %v276 = vpop.f32.mrf.mxu0
    %v277 = vadd.f32 0.0, %v276
    %v278 = vpop.f32.mrf.mxu0
    %v279 = vadd.f32 0.0, %v278
    %280 = vmatmul.bf16.gmra.mxu0 %v124
    %v281 = vpop.f32.mrf.mxu0
    %v282 = vadd.f32 0.0, %v281
    %v283 = vpop.f32.mrf.mxu0
    %v284 = vadd.f32 0.0, %v283
    %285 = vmatmul.bf16.gmra.mxu0 %v125
    %v286 = vpop.f32.mrf.mxu0
    %v287 = vadd.f32 0.0, %v286
    %v288 = vpop.f32.mrf.mxu0
    %v289 = vadd.f32 0.0, %v288
    %290 = vmatmul.bf16.gmra.mxu0 %v126
    %v291 = vpop.f32.mrf.mxu0
    %v292 = vadd.f32 0.0, %v291
    %v293 = vpop.f32.mrf.mxu0
    %v294 = vadd.f32 0.0, %v293
    %295 = vmatmul.bf16.gmra.mxu0 %v127
    %v296 = vpop.f32.mrf.mxu0
    %v297 = vadd.f32 0.0, %v296
    %v298 = vpop.f32.mrf.mxu0
    %v299 = vadd.f32 0.0, %v298
    %300 = vmatmul.bf16.gmra.mxu0 %v128
    %v301 = vpop.f32.mrf.mxu0
    %v302 = vadd.f32 0.0, %v301
    %v303 = vpop.f32.mrf.mxu0
    %v304 = vadd.f32 0.0, %v303
    %305 = vmatmul.bf16.gmra.mxu0 %v129
    %v306 = vpop.f32.mrf.mxu0
    %v307 = vadd.f32 0.0, %v306
    %v308 = vpop.f32.mrf.mxu0
    %v309 = vadd.f32 0.0, %v308
    %310 = vmatmul.bf16.gmra.mxu0 %v130
    %v311 = vpop.f32.mrf.mxu0
    %v312 = vadd.f32 0.0, %v311
    %v313 = vpop.f32.mrf.mxu0
    %v314 = vadd.f32 0.0, %v313
    %315 = vmatmul.bf16.gmra.mxu0 %v131
    %v316 = vpop.f32.mrf.mxu0
    %v317 = vadd.f32 0.0, %v316
    %v318 = vpop.f32.mrf.mxu0
    %v319 = vadd.f32 0.0, %v318
    %320 = vmatmul.bf16.gmra.mxu0 %v132
    %v321 = vpop.f32.mrf.mxu0
    %v322 = vadd.f32 0.0, %v321
    %v323 = vpop.f32.mrf.mxu0
    %v324 = vadd.f32 0.0, %v323
    %325 = vmatmul.bf16.gmra.mxu0 %v133
    %v326 = vpop.f32.mrf.mxu0
    %v327 = vadd.f32 0.0, %v326
    %v328 = vpop.f32.mrf.mxu0
    %v329 = vadd.f32 0.0, %v328
    %330 = vmatmul.bf16.gmra.mxu0 %v134
    %v331 = vpop.f32.mrf.mxu0
    %v332 = vadd.f32 0.0, %v331
    %v333 = vpop.f32.mrf.mxu0
    %v334 = vadd.f32 0.0, %v333
    %335 = vmatmul.bf16.gmra.mxu0 %v135
    %v336 = vpop.f32.mrf.mxu0
    %v337 = vadd.f32 0.0, %v336
    %v338 = vpop.f32.mrf.mxu0
    %v339 = vadd.f32 0.0, %v338
    %340 = vmatmul.bf16.gmra.mxu0 %v136
    %v341 = vpop.f32.mrf.mxu0
    %v342 = vadd.f32 0.0, %v341
    %v343 = vpop.f32.mrf.mxu0
    %v344 = vadd.f32 0.0, %v343
    %345 = vmatmul.bf16.gmra.mxu0 %v137
    %v346 = vpop.f32.mrf.mxu0
    %v347 = vadd.f32 0.0, %v346
    %v348 = vpop.f32.mrf.mxu0
    %v349 = vadd.f32 0.0, %v348
    %350 = vmatmul.bf16.gmra.mxu0 %v138
    %v351 = vpop.f32.mrf.mxu0
    %v352 = vadd.f32 0.0, %v351
    %v353 = vpop.f32.mrf.mxu0
    %v354 = vadd.f32 0.0, %v353
    %355 = vmatmul.bf16.gmra.mxu0 %v139
    %v356 = vpop.f32.mrf.mxu0
    %v357 = vadd.f32 0.0, %v356
    %v358 = vpop.f32.mrf.mxu0
    %v359 = vadd.f32 0.0, %v358
    %360 = vmatmul.bf16.gmra.mxu0 %v140
    %v361 = vpop.f32.mrf.mxu0
    %v362 = vadd.f32 0.0, %v361
    %v363 = vpop.f32.mrf.mxu0
    %v364 = vadd.f32 0.0, %v363
    %365 = vmatmul.bf16.gmra.mxu0 %v141
    %v366 = vpop.f32.mrf.mxu0
    %v367 = vadd.f32 0.0, %v366
    %v368 = vpop.f32.mrf.mxu0
    %v369 = vadd.f32 0.0, %v368
    %370 = vmatmul.bf16.gmra.mxu0 %v142
    %v371 = vpop.f32.mrf.mxu0
    %v372 = vadd.f32 0.0, %v371
    %v373 = vpop.f32.mrf.mxu0
    %v374 = vadd.f32 0.0, %v373
    %375 = vdwg.mxu0
    %v376 = vpack.c.bf16 %v217, %v217
    %v377 = vpack.c.bf16 %v219, %v219
    %v378 = vpack.c.bf16 %v222, %v222
    %v379 = vpack.c.bf16 %v224, %v224
    %v380 = vpack.c.bf16 %v227, %v227
    %v381 = vpack.c.bf16 %v229, %v229
    %v382 = vpack.c.bf16 %v232, %v232
    %v383 = vpack.c.bf16 %v234, %v234
    %v384 = vpack.c.bf16 %v237, %v237
    %v385 = vpack.c.bf16 %v239, %v239
    %v386 = vpack.c.bf16 %v242, %v242
    %v387 = vpack.c.bf16 %v244, %v244
    %v388 = vpack.c.bf16 %v247, %v247
    %v389 = vpack.c.bf16 %v249, %v249
    %v390 = vpack.c.bf16 %v252, %v252
    %v391 = vpack.c.bf16 %v254, %v254
    %v392 = vpack.c.bf16 %v257, %v257
    %v393 = vpack.c.bf16 %v259, %v259
    %v394 = vpack.c.bf16 %v262, %v262
    %v395 = vpack.c.bf16 %v264, %v264
    %v396 = vpack.c.bf16 %v267, %v267
    %v397 = vpack.c.bf16 %v269, %v269
    %v398 = vpack.c.bf16 %v272, %v272
    %v399 = vpack.c.bf16 %v274, %v274
    %v400 = vpack.c.bf16 %v277, %v277
    %v401 = vpack.c.bf16 %v279, %v279
    %v402 = vpack.c.bf16 %v282, %v282
    %v403 = vpack.c.bf16 %v284, %v284
    %v404 = vpack.c.bf16 %v287, %v287
    %v405 = vpack.c.bf16 %v289, %v289
    %v406 = vpack.c.bf16 %v292, %v292
    %v407 = vpack.c.bf16 %v294, %v294
    %v408 = vpack.c.bf16 %v297, %v297
    %v409 = vpack.c.bf16 %v299, %v299
    %v410 = vpack.c.bf16 %v302, %v302
    %v411 = vpack.c.bf16 %v304, %v304
    %v412 = vpack.c.bf16 %v307, %v307
    %v413 = vpack.c.bf16 %v309, %v309
    %v414 = vpack.c.bf16 %v312, %v312
    %v415 = vpack.c.bf16 %v314, %v314
    %v416 = vpack.c.bf16 %v317, %v317
    %v417 = vpack.c.bf16 %v319, %v319
    %v418 = vpack.c.bf16 %v322, %v322
    %v419 = vpack.c.bf16 %v324, %v324
    %v420 = vpack.c.bf16 %v327, %v327
    %v421 = vpack.c.bf16 %v329, %v329
    %v422 = vpack.c.bf16 %v332, %v332
    %v423 = vpack.c.bf16 %v334, %v334
    %v424 = vpack.c.bf16 %v337, %v337
    %v425 = vpack.c.bf16 %v339, %v339
    %v426 = vpack.c.bf16 %v342, %v342
    %v427 = vpack.c.bf16 %v344, %v344
    %v428 = vpack.c.bf16 %v347, %v347
    %v429 = vpack.c.bf16 %v349, %v349
    %v430 = vpack.c.bf16 %v352, %v352
    %v431 = vpack.c.bf16 %v354, %v354
    %v432 = vpack.c.bf16 %v357, %v357
    %v433 = vpack.c.bf16 %v359, %v359
    %v434 = vpack.c.bf16 %v362, %v362
    %v435 = vpack.c.bf16 %v364, %v364
    %v436 = vpack.c.bf16 %v367, %v367
    %v437 = vpack.c.bf16 %v369, %v369
    %v438 = vpack.c.bf16 %v372, %v372
    %v439 = vpack.c.bf16 %v374, %v374
    %440 = vst [vmem:[#allocation7] sm:$0xf] %v376
    %441 = vst [vmem:[#allocation7 + $0x4] sm:$0xf] %v377
    %442 = vst [vmem:[#allocation7 + $0x8] sm:$0xf] %v378
    %443 = vst [vmem:[#allocation7 + $0xc] sm:$0xf] %v379
    %444 = vst [vmem:[#allocation7 + $0x10] sm:$0xf] %v380
    %445 = vst [vmem:[#allocation7 + $0x14] sm:$0xf] %v381
    %446 = vst [vmem:[#allocation7 + $0x18] sm:$0xf] %v382
    %447 = vst [vmem:[#allocation7 + $0x1c] sm:$0xf] %v383
    %448 = vst [vmem:[#allocation7 + $0x20] sm:$0xf] %v384
    %449 = vst [vmem:[#allocation7 + $0x24] sm:$0xf] %v385
    %450 = vst [vmem:[#allocation7 + $0x28] sm:$0xf] %v386
    %451 = vst [vmem:[#allocation7 + $0x2c] sm:$0xf] %v387
    %452 = vst [vmem:[#allocation7 + $0x30] sm:$0xf] %v388
    %453 = vst [vmem:[#allocation7 + $0x34] sm:$0xf] %v389
    %454 = vst [vmem:[#allocation7 + $0x38] sm:$0xf] %v390
    %455 = vst [vmem:[#allocation7 + $0x3c] sm:$0xf] %v391
    %456 = vst [vmem:[#allocation7 + $0x40] sm:$0xf] %v392
    %457 = vst [vmem:[#allocation7 + $0x44] sm:$0xf] %v393
    %458 = vst [vmem:[#allocation7 + $0x48] sm:$0xf] %v394
    %459 = vst [vmem:[#allocation7 + $0x4c] sm:$0xf] %v395
    %460 = vst [vmem:[#allocation7 + $0x50] sm:$0xf] %v396
    %461 = vst [vmem:[#allocation7 + $0x54] sm:$0xf] %v397
    %462 = vst [vmem:[#allocation7 + $0x58] sm:$0xf] %v398
    %463 = vst [vmem:[#allocation7 + $0x5c] sm:$0xf] %v399
    %464 = vst [vmem:[#allocation7 + $0x60] sm:$0xf] %v400
    %465 = vst [vmem:[#allocation7 + $0x64] sm:$0xf] %v401
    %466 = vst [vmem:[#allocation7 + $0x68] sm:$0xf] %v402
    %467 = vst [vmem:[#allocation7 + $0x6c] sm:$0xf] %v403
    %468 = vst [vmem:[#allocation7 + $0x70] sm:$0xf] %v404
    %469 = vst [vmem:[#allocation7 + $0x74] sm:$0xf] %v405
    %470 = vst [vmem:[#allocation7 + $0x78] sm:$0xf] %v406
    %471 = vst [vmem:[#allocation7 + $0x7c] sm:$0xf] %v407
    %472 = vst [vmem:[#allocation7 + $0x80] sm:$0xf] %v408
    %473 = vst [vmem:[#allocation7 + $0x84] sm:$0xf] %v409
    %474 = vst [vmem:[#allocation7 + $0x88] sm:$0xf] %v410
    %475 = vst [vmem:[#allocation7 + $0x8c] sm:$0xf] %v411
    %476 = vst [vmem:[#allocation7 + $0x90] sm:$0xf] %v412
    %477 = vst [vmem:[#allocation7 + $0x94] sm:$0xf] %v413
    %478 = vst [vmem:[#allocation7 + $0x98] sm:$0xf] %v414
    %479 = vst [vmem:[#allocation7 + $0x9c] sm:$0xf] %v415
    %480 = vst [vmem:[#allocation7 + $0xa0] sm:$0xf] %v416
    %481 = vst [vmem:[#allocation7 + $0xa4] sm:$0xf] %v417
    %482 = vst [vmem:[#allocation7 + $0xa8] sm:$0xf] %v418
    %483 = vst [vmem:[#allocation7 + $0xac] sm:$0xf] %v419
    %484 = vst [vmem:[#allocation7 + $0xb0] sm:$0xf] %v420
    %485 = vst [vmem:[#allocation7 + $0xb4] sm:$0xf] %v421
    %486 = vst [vmem:[#allocation7 + $0xb8] sm:$0xf] %v422
    %487 = vst [vmem:[#allocation7 + $0xbc] sm:$0xf] %v423
    %488 = vst [vmem:[#allocation7 + $0xc0] sm:$0xf] %v424
    %489 = vst [vmem:[#allocation7 + $0xc4] sm:$0xf] %v425
    %490 = vst [vmem:[#allocation7 + $0xc8] sm:$0xf] %v426
    %491 = vst [vmem:[#allocation7 + $0xcc] sm:$0xf] %v427
    %492 = vst [vmem:[#allocation7 + $0xd0] sm:$0xf] %v428
    %493 = vst [vmem:[#allocation7 + $0xd4] sm:$0xf] %v429
    %494 = vst [vmem:[#allocation7 + $0xd8] sm:$0xf] %v430
    %495 = vst [vmem:[#allocation7 + $0xdc] sm:$0xf] %v431
    %496 = vst [vmem:[#allocation7 + $0xe0] sm:$0xf] %v432
    %497 = vst [vmem:[#allocation7 + $0xe4] sm:$0xf] %v433
    %498 = vst [vmem:[#allocation7 + $0xe8] sm:$0xf] %v434
    %499 = vst [vmem:[#allocation7 + $0xec] sm:$0xf] %v435
    %500 = vst [vmem:[#allocation7 + $0xf0] sm:$0xf] %v436
    %501 = vst [vmem:[#allocation7 + $0xf4] sm:$0xf] %v437
    %502 = vst [vmem:[#allocation7 + $0xf8] sm:$0xf] %v438
    %503 = vst [vmem:[#allocation7 + $0xfc] sm:$0xf] %v439
    %v504 = vadd.f32 %v217, %v219
    %v505 = vadd.f32 %v504, %v222
    %v506 = vadd.f32 %v505, %v224
    %v507 = vadd.f32 %v506, %v227
    %v508 = vadd.f32 %v507, %v229
    %v509 = vadd.f32 %v508, %v232
    %v510 = vadd.f32 %v509, %v234
    %v511 = vadd.f32 %v510, %v237
    %v512 = vadd.f32 %v511, %v239
    %v513 = vadd.f32 %v512, %v242
    %v514 = vadd.f32 %v513, %v244
    %v515 = vadd.f32 %v514, %v247
    %v516 = vadd.f32 %v515, %v249
    %v517 = vadd.f32 %v516, %v252
    %v518 = vadd.f32 %v517, %v254
    %v519 = vadd.f32 %v518, %v257
    %v520 = vadd.f32 %v519, %v259
    %v521 = vadd.f32 %v520, %v262
    %v522 = vadd.f32 %v521, %v264
    %v523 = vadd.f32 %v522, %v267
    %v524 = vadd.f32 %v523, %v269
    %v525 = vadd.f32 %v524, %v272
    %v526 = vadd.f32 %v525, %v274
    %v527 = vadd.f32 %v526, %v277
    %v528 = vadd.f32 %v527, %v279
    %v529 = vadd.f32 %v528, %v282
    %v530 = vadd.f32 %v529, %v284
    %v531 = vadd.f32 %v530, %v287
    %v532 = vadd.f32 %v531, %v289
    %v533 = vadd.f32 %v532, %v292
    %v534 = vadd.f32 %v533, %v294
    %v535 = vadd.f32 %v534, %v297
    %v536 = vadd.f32 %v535, %v299
    %v537 = vadd.f32 %v536, %v302
    %v538 = vadd.f32 %v537, %v304
    %v539 = vadd.f32 %v538, %v307
    %v540 = vadd.f32 %v539, %v309
    %v541 = vadd.f32 %v540, %v312
    %v542 = vadd.f32 %v541, %v314
    %v543 = vadd.f32 %v542, %v317
    %v544 = vadd.f32 %v543, %v319
    %v545 = vadd.f32 %v544, %v322
    %v546 = vadd.f32 %v545, %v324
    %v547 = vadd.f32 %v546, %v327
    %v548 = vadd.f32 %v547, %v329
    %v549 = vadd.f32 %v548, %v332
    %v550 = vadd.f32 %v549, %v334
    %v551 = vadd.f32 %v550, %v337
    %v552 = vadd.f32 %v551, %v339
    %v553 = vadd.f32 %v552, %v342
    %v554 = vadd.f32 %v553, %v344
    %v555 = vadd.f32 %v554, %v347
    %v556 = vadd.f32 %v555, %v349
    %v557 = vadd.f32 %v556, %v352
    %v558 = vadd.f32 %v557, %v354
    %v559 = vadd.f32 %v558, %v357
    %v560 = vadd.f32 %v559, %v359
    %v561 = vadd.f32 %v560, %v362
    %v562 = vadd.f32 %v561, %v364
    %v563 = vadd.f32 %v562, %v367
    %v564 = vadd.f32 %v563, %v369
    %v565 = vadd.f32 %v564, %v372
    %v566 = vadd.f32 %v565, %v374
    %v567 = vrot.slane %v566, 4
    %v568 = vadd.f32 %v566, %v567
    %v569 = vrot.slane %v568, 2
    %v570 = vadd.f32 %v568, %v569
    %v571 = vrot.slane %v570, 1
    %v572 = vadd.f32 %v570, %v571
    %v573 = vmul.f32 %v217, %v217
    %v574 = vmul.f32 %v219, %v219
    %v575 = vmul.f32 %v222, %v222
    %v576 = vmul.f32 %v224, %v224
    %v577 = vmul.f32 %v227, %v227
    %v578 = vmul.f32 %v229, %v229
    %v579 = vmul.f32 %v232, %v232
    %v580 = vmul.f32 %v234, %v234
    %v581 = vmul.f32 %v237, %v237
    %v582 = vmul.f32 %v239, %v239
    %v583 = vmul.f32 %v242, %v242
    %v584 = vmul.f32 %v244, %v244
    %v585 = vmul.f32 %v247, %v247
    %v586 = vmul.f32 %v249, %v249
    %v587 = vmul.f32 %v252, %v252
    %v588 = vmul.f32 %v254, %v254
    %v589 = vmul.f32 %v257, %v257
    %v590 = vmul.f32 %v259, %v259
    %v591 = vmul.f32 %v262, %v262
    %v592 = vmul.f32 %v264, %v264
    %v593 = vmul.f32 %v267, %v267
    %v594 = vmul.f32 %v269, %v269
    %v595 = vmul.f32 %v272, %v272
    %v596 = vmul.f32 %v274, %v274
    %v597 = vmul.f32 %v277, %v277
    %v598 = vmul.f32 %v279, %v279
    %v599 = vmul.f32 %v282, %v282
    %v600 = vmul.f32 %v284, %v284
    %v601 = vmul.f32 %v287, %v287
    %v602 = vmul.f32 %v289, %v289
    %v603 = vmul.f32 %v292, %v292
    %v604 = vmul.f32 %v294, %v294
    %v605 = vmul.f32 %v297, %v297
    %v606 = vmul.f32 %v299, %v299
    %v607 = vmul.f32 %v302, %v302
    %v608 = vmul.f32 %v304, %v304
    %v609 = vmul.f32 %v307, %v307
    %v610 = vmul.f32 %v309, %v309
    %v611 = vmul.f32 %v312, %v312
    %v612 = vmul.f32 %v314, %v314
    %v613 = vmul.f32 %v317, %v317
    %v614 = vmul.f32 %v319, %v319
    %v615 = vmul.f32 %v322, %v322
    %v616 = vmul.f32 %v324, %v324
    %v617 = vmul.f32 %v327, %v327
    %v618 = vmul.f32 %v329, %v329
    %v619 = vmul.f32 %v332, %v332
    %v620 = vmul.f32 %v334, %v334
    %v621 = vmul.f32 %v337, %v337
    %v622 = vmul.f32 %v339, %v339
    %v623 = vmul.f32 %v342, %v342
    %v624 = vmul.f32 %v344, %v344
    %v625 = vmul.f32 %v347, %v347
    %v626 = vmul.f32 %v349, %v349
    %v627 = vmul.f32 %v352, %v352
    %v628 = vmul.f32 %v354, %v354
    %v629 = vmul.f32 %v357, %v357
    %v630 = vmul.f32 %v359, %v359
    %v631 = vmul.f32 %v362, %v362
    %v632 = vmul.f32 %v364, %v364
    %v633 = vmul.f32 %v367, %v367
    %v634 = vmul.f32 %v369, %v369
    %v635 = vmul.f32 %v372, %v372
    %v636 = vmul.f32 %v374, %v374
    %v637 = vadd.f32 %v573, %v574
    %v638 = vadd.f32 %v637, %v575
    %v639 = vadd.f32 %v638, %v576
    %v640 = vadd.f32 %v639, %v577
    %v641 = vadd.f32 %v640, %v578
    %v642 = vadd.f32 %v641, %v579
    %v643 = vadd.f32 %v642, %v580
    %v644 = vadd.f32 %v643, %v581
    %v645 = vadd.f32 %v644, %v582
    %v646 = vadd.f32 %v645, %v583
    %v647 = vadd.f32 %v646, %v584
    %v648 = vadd.f32 %v647, %v585
    %v649 = vadd.f32 %v648, %v586
    %v650 = vadd.f32 %v649, %v587
    %v651 = vadd.f32 %v650, %v588
    %v652 = vadd.f32 %v651, %v589
    %v653 = vadd.f32 %v652, %v590
    %v654 = vadd.f32 %v653, %v591
    %v655 = vadd.f32 %v654, %v592
    %v656 = vadd.f32 %v655, %v593
    %v657 = vadd.f32 %v656, %v594
    %v658 = vadd.f32 %v657, %v595
    %v659 = vadd.f32 %v658, %v596
    %v660 = vadd.f32 %v659, %v597
    %v661 = vadd.f32 %v660, %v598
    %v662 = vadd.f32 %v661, %v599
    %v663 = vadd.f32 %v662, %v600
    %v664 = vadd.f32 %v663, %v601
    %v665 = vadd.f32 %v664, %v602
    %v666 = vadd.f32 %v665, %v603
    %v667 = vadd.f32 %v666, %v604
    %v668 = vadd.f32 %v667, %v605
    %v669 = vadd.f32 %v668, %v606
    %v670 = vadd.f32 %v669, %v607
    %v671 = vadd.f32 %v670, %v608
    %v672 = vadd.f32 %v671, %v609
    %v673 = vadd.f32 %v672, %v610
    %v674 = vadd.f32 %v673, %v611
    %v675 = vadd.f32 %v674, %v612
    %v676 = vadd.f32 %v675, %v613
    %v677 = vadd.f32 %v676, %v614
    %v678 = vadd.f32 %v677, %v615
    %v679 = vadd.f32 %v678, %v616
    %v680 = vadd.f32 %v679, %v617
    %v681 = vadd.f32 %v680, %v618
    %v682 = vadd.f32 %v681, %v619
    %v683 = vadd.f32 %v682, %v620
    %v684 = vadd.f32 %v683, %v621
    %v685 = vadd.f32 %v684, %v622
    %v686 = vadd.f32 %v685, %v623
    %v687 = vadd.f32 %v686, %v624
    %v688 = vadd.f32 %v687, %v625
    %v689 = vadd.f32 %v688, %v626
    %v690 = vadd.f32 %v689, %v627
    %v691 = vadd.f32 %v690, %v628
    %v692 = vadd.f32 %v691, %v629
    %v693 = vadd.f32 %v692, %v630
    %v694 = vadd.f32 %v693, %v631
    %v695 = vadd.f32 %v694, %v632
    %v696 = vadd.f32 %v695, %v633
    %v697 = vadd.f32 %v696, %v634
    %v698 = vadd.f32 %v697, %v635
    %v699 = vadd.f32 %v698, %v636
    %v700 = vrot.slane %v699, 4
    %v701 = vadd.f32 %v699, %v700
    %v702 = vrot.slane %v701, 2
    %v703 = vadd.f32 %v701, %v702
    %v704 = vrot.slane %v703, 1
    %v705 = vadd.f32 %v703, %v704
    %vm706 = vcmask 1040384
    %v707 = vsel %vm706, %v572, %v705
    %708 = vst [vmem:[#allocation8] sm:$0x3] %v707
    // Predicated region
    $region18: #{tpu_custom_call.1} parent=1 // pred_check
      _
    $region19: #{tpu_custom_call.1} parent=1 // pred_check_branch
      %710 = sbr.rel (0) target = $region21
    $region20: #{tpu_custom_call.1} parent=1 // pred_region
      %712 = vsyncadd [#allocation4], 0
      %s713 = sshll.u32 [#allocation7], 4
      %s714 = int_to_ptr.vmem [resolvable:$true] %s713
      %s715 = sshll.u32 %s2, 4
      %s716 = int_to_ptr.hbm [resolvable:$true] %s715
      %721 = dma.vmem_to_hbm [thread:$0]  %s714, 4096, %s716, [#allocation4], 64, 64, 4
    $region21: #{tpu_custom_call.1} parent=1 // pred_fallthru
      _
    // Predicated region
    $region22: #{tpu_custom_call.1} parent=1 // pred_check
      _
    $region23: #{tpu_custom_call.1} parent=1 // pred_check_branch
      %723 = sbr.rel (0) target = $region25
    $region24: #{tpu_custom_call.1} parent=1 // pred_region
      %725 = vsyncadd [#allocation9], 0
      %s727 = sshll.u32 [#allocation8], 4
      %s728 = int_to_ptr.vmem [resolvable:$true] %s727
      %s729 = sshll.u32 %s3, 4
      %s730 = int_to_ptr.hbm [resolvable:$true] %s729
      %732 = dma.vmem_to_hbm [thread:$0]  %s728, 32, %s730, [#allocation9]
    $region25: #{tpu_custom_call.1} parent=1 // pred_fallthru
      _
    // Predicated region
    $region26: #{tpu_custom_call.1} parent=1 // pred_check
      _
    $region27: #{tpu_custom_call.1} parent=1 // pred_check_branch
      %734 = sbr.rel (0) target = $region29
    $region28: #{tpu_custom_call.1} parent=1 // pred_region
      %736 = dma.done [#allocation4], 4096
    $region29: #{tpu_custom_call.1} parent=1 // pred_fallthru
      _
    // Predicated region
    $region30: #{tpu_custom_call.1} parent=1 // pred_check
      _
    $region31: #{tpu_custom_call.1} parent=1 // pred_check_branch
      %738 = sbr.rel (0) target = $region33
    $region32: #{tpu_custom_call.1} parent=1 // pred_region
      %740 = dma.done [#allocation9], 32
    $region33: #{tpu_custom_call.1} parent=1 // pred_fallthru
      _
    %741 = vsyncpa [#allocation3], 1
    %742 = vsyncpa [#allocation6], 1
    %743 = vsyncpa [#allocation4], 1
    %744 = vsyncpa [#allocation9], 1

</llo_original>
